<compile_context>
chip_gen: v5e
topology: v5e:2x2
jax: 0.10.0
libtpu: 0.0.40
codegen_flags: <defaults>
</compile_context>

<pallas_src>
import math

import jax
import jax.numpy as jnp
from jax.experimental import pallas as pl
from jax.experimental.pallas import tpu as pltpu

_SQRT3 = math.sqrt(3.0)


def _sphere_l2_kernel(v_ref, out_ref):
    # v_ref:   (3, R, 128)  — x/y/z on the leading axis, rows of 128 edges.
    # out_ref: (8, R, 128)  — spherical-harmonic channels on the leading axis.
    # Every load/compute/store below is an (R, 128) sublane+lane-dense slab.
    od = out_ref.dtype
    x = v_ref[0].astype(jnp.float32)
    y = v_ref[1].astype(jnp.float32)
    z = v_ref[2].astype(jnp.float32)

    out_ref[0] = x.astype(od)
    out_ref[1] = y.astype(od)
    out_ref[2] = z.astype(od)
    out_ref[3] = (_SQRT3 * (x * z)).astype(od)
    out_ref[4] = (_SQRT3 * (x * y)).astype(od)
    out_ref[5] = (y * y - 0.5 * (x * x + z * z)).astype(od)
    out_ref[6] = (_SQRT3 * (y * z)).astype(od)
    out_ref[7] = ((0.5 * _SQRT3) * (z * z - x * x)).astype(od)


def _row_tile(n_rows, max_rows, mult):
    """Rows (of 128 edges) per grid step.

    Chosen as a multiple of `mult` (sublane packing for the element width),
    capped at `max_rows`, and split so there are >= 2 roughly balanced tiles
    whenever possible (v7x has two TensorCores sharing the 'parallel' axis).
    """
    if n_rows <= mult:
        return n_rows                       # one block spanning the full (short) dim
    r = min(max_rows, n_rows)
    if r >= n_rows and n_rows >= 2 * mult:
        r = -(-n_rows // 2)                 # ceil(n_rows / 2): guarantee 2 tiles
    r = max(mult, (r // mult) * mult)
    return min(r, n_rows)


def sphere_channels_first(v_cf, *, l=2, tile_edges=32768):
    """Channels-first Sphere: v_cf (3, E) -> (8, E) for l=2 (or (3, E) for l=1).

    Zero-copy entry point: no HBM transposes, only free contiguous reshapes
    around the Pallas call. Output dtype == input dtype.
    """
    assert l in (1, 2), "Sphere supports l in {1, 2}"
    assert v_cf.ndim == 2 and v_cf.shape[0] == 3
    if l == 1:
        return v_cf                         # l=1 harmonics are the input itself
    E = int(v_cf.shape[1])
    dtype = v_cf.dtype
    if E == 0:
        return jnp.zeros((8, 0), dtype)

    # Pad only to the next multiple of 128 (lane width) when needed; any
    # remaining raggedness w.r.t. the tile size is handled by Pallas' masked
    # last block (no whole-array pad copy for it).
    E_pad = -(-E // 128) * 128
    if E_pad != E:
        v_cf = jnp.pad(v_cf, ((0, 0), (0, E_pad - E)))
    n_rows = E_pad // 128

    # Sublane packing multiple depends on element width (f32: 8, bf16: 16, i8: 32).
    mult = {4: 8, 2: 16, 1: 32}.get(jnp.dtype(dtype).itemsize, 8)
    max_rows = max(mult, int(tile_edges) // 128)
    r_tile = _row_tile(n_rows, max_rows, mult)
    n_tiles = pl.cdiv(n_rows, r_tile)

    v3 = v_cf.reshape(3, n_rows, 128)       # free contiguous reshape

    out3 = pl.pallas_call(
        _sphere_l2_kernel,
        out_shape=jax.ShapeDtypeStruct((8, n_rows, 128), dtype),
        grid_spec=pltpu.PrefetchScalarGridSpec(
            num_scalar_prefetch=0,
            grid=(n_tiles,),
            in_specs=[pl.BlockSpec((3, r_tile, 128), lambda i: (0, i, 0))],
            out_specs=pl.BlockSpec((8, r_tile, 128), lambda i: (0, i, 0)),
        ),
        compiler_params=pltpu.CompilerParams(
            dimension_semantics=("parallel",),
        ),
    )(v3)

    out = out3.reshape(8, E_pad)            # free contiguous reshape
    if E_pad != E:
        out = out[:, :E]
    return out


def sphere(edge_vec, *, l=2, tile_edges=32768):
    """Drop-in Sphere.forward: edge_vec (..., 3) -> (..., 8) (l=2) / (..., 3) (l=1).

    Keeps the module's last-axis layout, which costs two XLA layout copies
    around the roofline-bound kernel; use `sphere_channels_first` (or fuse into
    the consumer) to avoid them.
    """
    assert l in (1, 2), "Sphere supports l in {1, 2}"
    assert edge_vec.shape[-1] == 3
    if l == 1:
        return edge_vec                     # identity: no kernel, no HBM round-trip
    lead = edge_vec.shape[:-1]
    E = 1
    for d in lead:
        E *= int(d)
    if E == 0:
        return jnp.zeros(lead + (8,), edge_vec.dtype)

    v_cf = edge_vec.reshape(E, 3).T         # layout plumbing (not compute)
    out_cf = sphere_channels_first(v_cf, l=l, tile_edges=tile_edges)
    return out_cf.T.reshape(lead + (8,))    # layout plumbing (not compute)


def _reference(edge_vec, l=2):
    x = edge_vec[..., 0]
    y = edge_vec[..., 1]
    z = edge_vec[..., 2]
    if l == 1:
        return jnp.stack([x, y, z], axis=-1)
    s3 = math.sqrt(3.0)
    return jnp.stack(
        [
            x, y, z,
            s3 * (x * z),
            s3 * (x * y),
            y * y - 0.5 * (x * x + z * z),
            s3 * (y * z),
            (0.5 * s3) * (z * z - x * x),
        ],
        axis=-1,
    )


if __name__ == "__main__":
    # 1) Main check: f32, E divisible by 128 (no padding), multi-tile grid.
    E = 4096
    edge_vec = jax.random.normal(jax.random.PRNGKey(0), (E, 3), dtype=jnp.float32)
    out = jax.block_until_ready(sphere(edge_vec, l=2, tile_edges=2048))
    ref = _reference(edge_vec, l=2)
    assert out.shape == (E, 8) and out.dtype == edge_vec.dtype
    assert jnp.allclose(out, ref, atol=1e-5, rtol=1e-5), "l=2 mismatch vs reference"

    # Channels-first (zero-copy) entry point agrees as well.
    out_cf = jax.block_until_ready(
        sphere_channels_first(edge_vec.T, l=2, tile_edges=2048))
    assert out_cf.shape == (8, E)
    assert jnp.allclose(out_cf, ref.T, atol=1e-5, rtol=1e-5), "channels-first mismatch"

    # 2) E not a multiple of 128 exercises the (minimal) padding path.
    ev2 = jax.random.normal(jax.random.PRNGKey(1), (300, 3), dtype=jnp.float32)
    out2 = jax.block_until_ready(sphere(ev2, l=2))
    assert out2.shape == (300, 8)
    assert jnp.allclose(out2, _reference(ev2, l=2), atol=1e-5, rtol=1e-5)

    # 3) dtype preservation: bf16 in -> bf16 out (f32 math in-register).
    ev3 = jax.random.normal(jax.random.PRNGKey(2), (2048, 3), dtype=jnp.bfloat16)
    out3 = jax.block_until_ready(sphere(ev3, l=2))
    assert out3.dtype == jnp.bfloat16
    ref3 = _reference(ev3.astype(jnp.float32), l=2)
    assert jnp.allclose(out3.astype(jnp.float32), ref3, atol=2e-2, rtol=2e-2)

    # 4) l == 1 short-circuit (result is the input itself).
    out1 = sphere(edge_vec, l=1)
    assert jnp.allclose(out1, _reference(edge_vec, l=1))

    print("KERNEL_OK")
</pallas_src>

<mosaic_0001>
module attributes {stable_mosaic.version = 11 : i64} {
  func.func @_sphere_l2_kernel(%arg0: i32, %arg1: memref<3x16x128xf32, #tpu.memory_space<vmem>>, %arg2: memref<8x16x128xf32, #tpu.memory_space<vmem>>) attributes {dimension_semantics = [#tpu.dimension_semantics<parallel>], iteration_bounds = array<i64: 2>, scalar_prefetch = 0 : i64, scratch_operands = 0 : i64, tpu.core_type = #tpu.core_type<tc>, window_params = [{transform_indices = @transform_0, window_bounds = array<i64: 3, 16, 128>}, {transform_indices = @transform_1, window_bounds = array<i64: 8, 16, 128>}]} {
    %c0 = arith.constant 0 : index
    %c0_0 = arith.constant 0 : index
    %c0_1 = arith.constant 0 : index
    %0 = vector.load %arg1[%c0, %c0_0, %c0_1] : memref<3x16x128xf32, #tpu.memory_space<vmem>>, vector<1x16x128xf32>
    %1 = vector.shape_cast %0 : vector<1x16x128xf32> to vector<16x128xf32>
    %c1 = arith.constant 1 : index
    %c0_2 = arith.constant 0 : index
    %c0_3 = arith.constant 0 : index
    %2 = vector.load %arg1[%c1, %c0_2, %c0_3] : memref<3x16x128xf32, #tpu.memory_space<vmem>>, vector<1x16x128xf32>
    %3 = vector.shape_cast %2 : vector<1x16x128xf32> to vector<16x128xf32>
    %c2 = arith.constant 2 : index
    %c0_4 = arith.constant 0 : index
    %c0_5 = arith.constant 0 : index
    %4 = vector.load %arg1[%c2, %c0_4, %c0_5] : memref<3x16x128xf32, #tpu.memory_space<vmem>>, vector<1x16x128xf32>
    %5 = vector.shape_cast %4 : vector<1x16x128xf32> to vector<16x128xf32>
    %c0_6 = arith.constant 0 : index
    %c0_7 = arith.constant 0 : index
    %c0_8 = arith.constant 0 : index
    %6 = vector.load %arg2[%c0_6, %c0_7, %c0_8] : memref<8x16x128xf32, #tpu.memory_space<vmem>>, vector<1x16x128xf32>
    %7 = vector.shape_cast %6 : vector<1x16x128xf32> to vector<16x128xf32>
    %8 = vector.shape_cast %1 : vector<16x128xf32> to vector<1x16x128xf32>
    tpu.vector_store %arg2[%c0_6, %c0_7, %c0_8], %8 {strides = array<i32>} : memref<8x16x128xf32, #tpu.memory_space<vmem>>, vector<1x16x128xf32>,
    %c1_9 = arith.constant 1 : index
    %c0_10 = arith.constant 0 : index
    %c0_11 = arith.constant 0 : index
    %9 = vector.load %arg2[%c1_9, %c0_10, %c0_11] : memref<8x16x128xf32, #tpu.memory_space<vmem>>, vector<1x16x128xf32>
    %10 = vector.shape_cast %9 : vector<1x16x128xf32> to vector<16x128xf32>
    %11 = vector.shape_cast %3 : vector<16x128xf32> to vector<1x16x128xf32>
    tpu.vector_store %arg2[%c1_9, %c0_10, %c0_11], %11 {strides = array<i32>} : memref<8x16x128xf32, #tpu.memory_space<vmem>>, vector<1x16x128xf32>,
    %c2_12 = arith.constant 2 : index
    %c0_13 = arith.constant 0 : index
    %c0_14 = arith.constant 0 : index
    %12 = vector.load %arg2[%c2_12, %c0_13, %c0_14] : memref<8x16x128xf32, #tpu.memory_space<vmem>>, vector<1x16x128xf32>
    %13 = vector.shape_cast %12 : vector<1x16x128xf32> to vector<16x128xf32>
    %14 = vector.shape_cast %5 : vector<16x128xf32> to vector<1x16x128xf32>
    tpu.vector_store %arg2[%c2_12, %c0_13, %c0_14], %14 {strides = array<i32>} : memref<8x16x128xf32, #tpu.memory_space<vmem>>, vector<1x16x128xf32>,
    %15 = arith.mulf %1, %5 : vector<16x128xf32>
    %cst = arith.constant 1.73205078 : f32
    %16 = vector.broadcast %cst : f32 to vector<16x128xf32>
    %17 = arith.mulf %16, %15 : vector<16x128xf32>
    %c3 = arith.constant 3 : index
    %c0_15 = arith.constant 0 : index
    %c0_16 = arith.constant 0 : index
    %18 = vector.load %arg2[%c3, %c0_15, %c0_16] : memref<8x16x128xf32, #tpu.memory_space<vmem>>, vector<1x16x128xf32>
    %19 = vector.shape_cast %18 : vector<1x16x128xf32> to vector<16x128xf32>
    %20 = vector.shape_cast %17 : vector<16x128xf32> to vector<1x16x128xf32>
    tpu.vector_store %arg2[%c3, %c0_15, %c0_16], %20 {strides = array<i32>} : memref<8x16x128xf32, #tpu.memory_space<vmem>>, vector<1x16x128xf32>,
    %21 = arith.mulf %1, %3 : vector<16x128xf32>
    %cst_17 = arith.constant 1.73205078 : f32
    %22 = vector.broadcast %cst_17 : f32 to vector<16x128xf32>
    %23 = arith.mulf %22, %21 : vector<16x128xf32>
    %c4 = arith.constant 4 : index
    %c0_18 = arith.constant 0 : index
    %c0_19 = arith.constant 0 : index
    %24 = vector.load %arg2[%c4, %c0_18, %c0_19] : memref<8x16x128xf32, #tpu.memory_space<vmem>>, vector<1x16x128xf32>
    %25 = vector.shape_cast %24 : vector<1x16x128xf32> to vector<16x128xf32>
    %26 = vector.shape_cast %23 : vector<16x128xf32> to vector<1x16x128xf32>
    tpu.vector_store %arg2[%c4, %c0_18, %c0_19], %26 {strides = array<i32>} : memref<8x16x128xf32, #tpu.memory_space<vmem>>, vector<1x16x128xf32>,
    %27 = arith.mulf %3, %3 : vector<16x128xf32>
    %28 = arith.mulf %1, %1 : vector<16x128xf32>
    %29 = arith.mulf %5, %5 : vector<16x128xf32>
    %30 = arith.addf %28, %29 : vector<16x128xf32>
    %cst_20 = arith.constant 5.000000e-01 : f32
    %31 = vector.broadcast %cst_20 : f32 to vector<16x128xf32>
    %32 = arith.mulf %31, %30 : vector<16x128xf32>
    %33 = arith.subf %27, %32 : vector<16x128xf32>
    %c5 = arith.constant 5 : index
    %c0_21 = arith.constant 0 : index
    %c0_22 = arith.constant 0 : index
    %34 = vector.load %arg2[%c5, %c0_21, %c0_22] : memref<8x16x128xf32, #tpu.memory_space<vmem>>, vector<1x16x128xf32>
    %35 = vector.shape_cast %34 : vector<1x16x128xf32> to vector<16x128xf32>
    %36 = vector.shape_cast %33 : vector<16x128xf32> to vector<1x16x128xf32>
    tpu.vector_store %arg2[%c5, %c0_21, %c0_22], %36 {strides = array<i32>} : memref<8x16x128xf32, #tpu.memory_space<vmem>>, vector<1x16x128xf32>,
    %37 = arith.mulf %3, %5 : vector<16x128xf32>
    %cst_23 = arith.constant 1.73205078 : f32
    %38 = vector.broadcast %cst_23 : f32 to vector<16x128xf32>
    %39 = arith.mulf %38, %37 : vector<16x128xf32>
    %c6 = arith.constant 6 : index
    %c0_24 = arith.constant 0 : index
    %c0_25 = arith.constant 0 : index
    %40 = vector.load %arg2[%c6, %c0_24, %c0_25] : memref<8x16x128xf32, #tpu.memory_space<vmem>>, vector<1x16x128xf32>
    %41 = vector.shape_cast %40 : vector<1x16x128xf32> to vector<16x128xf32>
    %42 = vector.shape_cast %39 : vector<16x128xf32> to vector<1x16x128xf32>
    tpu.vector_store %arg2[%c6, %c0_24, %c0_25], %42 {strides = array<i32>} : memref<8x16x128xf32, #tpu.memory_space<vmem>>, vector<1x16x128xf32>,
    %43 = arith.mulf %5, %5 : vector<16x128xf32>
    %44 = arith.mulf %1, %1 : vector<16x128xf32>
    %45 = arith.subf %43, %44 : vector<16x128xf32>
    %cst_26 = arith.constant 0.866025388 : f32
    %46 = vector.broadcast %cst_26 : f32 to vector<16x128xf32>
    %47 = arith.mulf %46, %45 : vector<16x128xf32>
    %c7 = arith.constant 7 : index
    %c0_27 = arith.constant 0 : index
    %c0_28 = arith.constant 0 : index
    %48 = vector.load %arg2[%c7, %c0_27, %c0_28] : memref<8x16x128xf32, #tpu.memory_space<vmem>>, vector<1x16x128xf32>
    %49 = vector.shape_cast %48 : vector<1x16x128xf32> to vector<16x128xf32>
    %50 = vector.shape_cast %47 : vector<16x128xf32> to vector<1x16x128xf32>
    tpu.vector_store %arg2[%c7, %c0_27, %c0_28], %50 {strides = array<i32>} : memref<8x16x128xf32, #tpu.memory_space<vmem>>, vector<1x16x128xf32>,
    return
  }
  func.func @transform_0(%arg0: i32) -> (i32, i32, i32) {
    %c0_i32 = arith.constant 0 : i32
    %c0_i32_0 = arith.constant 0 : i32
    %c0_i32_1 = arith.constant 0 : i32
    return %c0_i32, %arg0, %c0_i32_0 : i32, i32, i32
  }
  func.func @transform_1(%arg0: i32) -> (i32, i32, i32) {
    %c0_i32 = arith.constant 0 : i32
    %c0_i32_0 = arith.constant 0 : i32
    %c0_i32_1 = arith.constant 0 : i32
    return %c0_i32, %arg0, %c0_i32_0 : i32, i32, i32
  }
}

</mosaic_0001>

<llo_original>
// kernel: tpu_custom_call.1
$region0: #{tpu_custom_call.1}
  #allocation0 [shape = 'u32[]', space=smem, size = 0x4, offset = 0x4, fixed_abs, tag = 'smem constant byte address 0x4 - core index']
  #allocation1 [shape = 'u32[72,128]{1,0:T(1,128)}', space=vmem, size = 0x9000, scoped, tag = 'internal scratch']
  #allocation6 [shape = 's32[]', space=sflag, size = 0x4, offset = 0, fixed_abs, tag = 'sflag constant byte address 0x0 - dummy sync flag']
  #allocation8 [shape = 's32[]', space=sflag, size = 0x4, offset = 0, fixed_abs, tag = 'sflag constant byte address 0x0 - dummy sync flag']
  %s0 = inlined_call_operand.hbm [shape: f32[3,32,128], index: 0, kind: input, shape index: {}]
  %s1 = inlined_call_operand.hbm [shape: f32[8,32,128], index: 1, kind: output, shape index: {}]
  %s2 = sld [smem:[#allocation0]]
  $region41: #{tpu_custom_call.1} parent=0
    _
  %s4 = ssub.s32 1, %s2
  %s5 = scalar_select 0, %s4, %s2
  $region1: #{tpu_custom_call.1} parent=0
    #allocation2 [shape = 'u8[49152]{0}', space=vmem, size = 0xc000, scoped, tag = 'input window, operand 0']
    #allocation3 [shape = 's32[2]{0}', space=sflag, size = 0x8, scoped, tag = 'scoped memory for tpu_custom_call.1']
    #allocation4 [shape = 's32[2]{0}', space=sflag, size = 0x8, scoped, tag = 'scoped memory for tpu_custom_call.1']
    #allocation5 [shape = 'u8[131072]{0}', space=vmem, size = 0x20000, scoped, tag = 'output window, operand 0']
    %6 = vsyncpa [#allocation3], 0
    %s7 = scalar_lea.sflag [#allocation3], 1
    %8 = vsyncpa %s7, 0
    %9 = vsyncpa [#allocation4], 0
    %s10 = scalar_lea.sflag [#allocation4], 1
    %11 = vsyncpa %s10, 0
    loop: start=0, step=1, limit=4
    $region2: #{tpu_custom_call.1} parent=1 // loop_pre_header
      _
    $region3: #{tpu_custom_call.1} parent=1 // loop_header
      %s13 = sphi 0, %s17
      %p14 = scmp.ge.s32.totalorder %s13, 4
      %s23 = sphi 0, %s25
      %s26 = sphi 0, %s23
      %s27 = sphi 0, %s26
      %s43 = sphi 0, %s27
      %s49 = sphi 0, %s51
      %s52 = sphi 0, %s49
      %s53 = sphi 0, %s52
      %s69 = sphi 0, %s53
    $region4: #{tpu_custom_call.1} parent=1 // loop_header_branch
      %16 = sbr.rel (%p14) target = $region8
    $region5: #{tpu_custom_call.1} parent=1 // loop_body
      %s18 = ssub.s32 %s13, 1
      %s19 = ssub.s32 %s13, 2
      %s20 = sadd.s32 %s13, 1
      %s21 = ssub.s32 %s13, %s20
      %p22 = scmp.eq.s32.totalorder %s21, 0
      %s24 = sadd.s32 %s23, 1
      %s25 = scalar_select %p22, %s23, %s24
      %p28 = pneg %p22
      %p29 = scmp.eq.s32.totalorder %s13, 1
      %p30 = por %p28, %p29
      %p31 = scmp.ne.s32.totalorder %s23, %s26
      %p32 = scmp.eq.s32.totalorder %s13, 0
      %p33 = por %p31, %p32
      %p34 = scmp.ne.s32.totalorder %s23, %s26
      %p35 = scmp.eq.s32.totalorder %s18, 1
      %p36 = por %p34, %p35
      %p37 = scmp.ne.s32.totalorder %s26, %s27
      %p38 = scmp.eq.s32.totalorder %s18, 0
      %p39 = por %p37, %p38
      %p40 = scmp.ne.s32.totalorder %s26, %s27
      %p41 = scmp.eq.s32.totalorder %s19, 1
      %p42 = por %p40, %p41
      %p44 = scmp.ne.s32.totalorder %s27, %s43
      %p45 = scmp.eq.s32.totalorder %s19, 0
      %p46 = por %p44, %p45
      %s47 = ssub.s32 %s13, %s20
      %p48 = scmp.eq.s32.totalorder %s47, 0
      %s50 = sadd.s32 %s49, 1
      %s51 = scalar_select %p48, %s49, %s50
      %p54 = pneg %p48
      %p55 = scmp.eq.s32.totalorder %s13, 1
      %p56 = por %p54, %p55
      %p57 = scmp.ne.s32.totalorder %s49, %s52
      %p58 = scmp.eq.s32.totalorder %s13, 0
      %p59 = por %p57, %p58
      %p60 = scmp.ne.s32.totalorder %s49, %s52
      %p61 = scmp.eq.s32.totalorder %s18, 1
      %p62 = por %p60, %p61
      %p63 = scmp.ne.s32.totalorder %s52, %s53
      %p64 = scmp.eq.s32.totalorder %s18, 0
      %p65 = por %p63, %p64
      %p66 = scmp.ne.s32.totalorder %s52, %s53
      %p67 = scmp.eq.s32.totalorder %s19, 1
      %p68 = por %p66, %p67
      %p70 = scmp.ne.s32.totalorder %s53, %s69
      %p71 = scmp.eq.s32.totalorder %s19, 0
      %p72 = por %p70, %p71
      %p73 = scmp.le.s32.totalorder 1, %s13
      %p74 = scmp.lt.s32.totalorder %s13, 3
      %p75 = pnand %p73, %p74
      %p76 = pneg %p75
      // Predicated region
      $region9: #{tpu_custom_call.1} parent=5 // pred_check
        _
      $region10: #{tpu_custom_call.1} parent=5 // pred_check_branch
        %78 = sbr.rel (%p75) target = $region12
      $region11: #{tpu_custom_call.1} parent=5 // pred_region
        %s79 = ssub.s32 %s13, 1
      $region12: #{tpu_custom_call.1} parent=5 // pred_fallthru
        _
      %p80 = scmp.lt.s32.totalorder %s13, 2
      // Predicated region
      $region13: #{tpu_custom_call.1} parent=5 // pred_check
        %p81 = pneg %p80
      $region14: #{tpu_custom_call.1} parent=5 // pred_check_branch
        %83 = sbr.rel (%p81) target = $region16
      $region15: #{tpu_custom_call.1} parent=5 // pred_region
        // Predicated region
        $region17: #{tpu_custom_call.1} parent=15 // pred_check
          %p84 = pneg %p33
        $region18: #{tpu_custom_call.1} parent=15 // pred_check_branch
          %86 = sbr.rel (%p84) target = $region20
        $region19: #{tpu_custom_call.1} parent=15 // pred_region
          #allocation7 [shape = 'u32[6]{0}', space=smem, size = 0x18, scoped, tag = 'DMA stride descriptor']
          %s87 = sand.u32 %s23, 1
          %s88 = scalar_lea.sflag [#allocation3], %s87
          %s89 = sand.u32 %s23, 1
          %s90 = smul.addr %s89, 48
          %s91 = scalar_lea.vmem [#allocation2], %s90
          %s92 = smul.u32 2, %s13
          %94 = vsyncadd %s88, 0
          %s95 = smul.addr %s92, 8
          %s96 = scalar_lea.hbm %s0, %s95
          %s98 = sshll.u32 1, 14
          %s99 = sxor.u32 4294967295, %s98
          %s101 = sld [smem:[#allocation0]]
          %s102 = sadd.s32 2, %s101
          %s104 = sshll.u32 7, 26
          %s105 = sxor.u32 4294967295, %s104
          %s106 = sand.u32 0, %s105
          %s107 = sshll.u32 %s102, 26
          %s108 = sor.u32 %s106, %s107
          %s109 = sshll.u32 %s96, 4
          %s110 = int_to_ptr.hbm [resolvable:$true] %s109
          %s111 = sshll.u32 %s91, 4
          %s112 = int_to_ptr.vmem [resolvable:$true] %s111
          %118 = sst [smem:[#allocation7]] 512
          %s119 = scalar_lea.smem [#allocation7], 1
          %120 = sst [smem:[%s119]] 256
          %s121 = scalar_lea.smem [#allocation7], 2
          %122 = sst [smem:[%s121]] 2
          %s123 = scalar_lea.smem [#allocation7], 3
          %124 = sst [smem:[%s123]] 128
          %s125 = scalar_lea.smem [#allocation7], 4
          %126 = sst [smem:[%s125]] 128
          %s127 = scalar_lea.smem [#allocation7], 5
          %128 = sst [smem:[%s127]] 8
          %130 = dma.general %s110, 768, %s112, %s88, [#allocation6], [#allocation7], %s108, 0
        $region20: #{tpu_custom_call.1} parent=15 // pred_fallthru
          _
      $region16: #{tpu_custom_call.1} parent=5 // pred_fallthru
        _
      %p131 = scmp.le.s32.totalorder 1, %s13
      %p132 = scmp.lt.s32.totalorder %s13, 3
      %p133 = pnand %p131, %p132
      %p134 = pneg %p133
      // Predicated region
      $region21: #{tpu_custom_call.1} parent=5 // pred_check
        _
      $region22: #{tpu_custom_call.1} parent=5 // pred_check_branch
        %136 = sbr.rel (%p133) target = $region24
      $region23: #{tpu_custom_call.1} parent=5 // pred_region
        %s137 = ssub.s32 %s13, 1
        %s138 = sand.u32 %s26, 1
        %s139 = scalar_lea.sflag [#allocation3], %s138
        %s140 = sand.u32 %s26, 1
        %s141 = smul.addr %s140, 48
        %s142 = scalar_lea.vmem [#allocation2], %s141
        // Predicated region
        $region25: #{tpu_custom_call.1} parent=23 // pred_check
          %p143 = pneg %p39
        $region26: #{tpu_custom_call.1} parent=23 // pred_check_branch
          %145 = sbr.rel (%p143) target = $region28
        $region27: #{tpu_custom_call.1} parent=23 // pred_region
          %147 = dma.done %s139, 768
        $region28: #{tpu_custom_call.1} parent=23 // pred_fallthru
          _
        %s148 = sand.u32 %s26, 1
        %s149 = scalar_lea.sflag [#allocation3], %s148
        %s150 = sand.u32 %s26, 1
        %s151 = smul.addr %s150, 48
        %s152 = scalar_lea.vmem [#allocation2], %s151
        %p153 = pneg %p39
        %p154 = pneg %p36
        %p155 = pneg %p65
        %p156 = pneg %p62
        %s157 = sand.u32 %s52, 1
        %s158 = scalar_lea.sflag [#allocation4], %s157
        %s159 = sand.u32 %s52, 1
        %s160 = smul.addr %s159, 128
        %s161 = scalar_lea.vmem [#allocation5], %s160
        %s162 = smul.u32 2, %s18
        %s163 = smul.u32 2, %s18
        %v164 = vld [vmem:[%s142] sm:$0xff]
        %v165 = vld [vmem:[%s142 + $0x8] sm:$0xff]
        %s166 = scalar_lea.vmem %s142, 16 [#allocation2]
        %v167 = vld [vmem:[%s166] sm:$0xff]
        %v168 = vld [vmem:[%s166 + $0x8] sm:$0xff]
        %s169 = scalar_lea.vmem %s142, 32 [#allocation2]
        %v170 = vld [vmem:[%s169] sm:$0xff]
        %v171 = vld [vmem:[%s169 + $0x8] sm:$0xff]
        %172 = vst [vmem:[%s161] sm:$0xff] %v164
        %173 = vst [vmem:[%s161 + $0x8] sm:$0xff] %v165
        %s174 = scalar_lea.vmem %s161, 16 [#allocation5]
        %175 = vst [vmem:[%s174] sm:$0xff] %v167
        %176 = vst [vmem:[%s174 + $0x8] sm:$0xff] %v168
        %s177 = scalar_lea.vmem %s161, 32 [#allocation5]
        %178 = vst [vmem:[%s177] sm:$0xff] %v170
        %179 = vst [vmem:[%s177 + $0x8] sm:$0xff] %v171
        %v180 = vmul.f32 %v164, %v170
        %v181 = vmul.f32 %v165, %v171
        %v182 = vmul.f32 %v180, 1.7320508
        %v183 = vmul.f32 %v181, 1.7320508
        %s184 = scalar_lea.vmem %s161, 48 [#allocation5]
        %185 = vst [vmem:[%s184] sm:$0xff] %v182
        %186 = vst [vmem:[%s184 + $0x8] sm:$0xff] %v183
        %v187 = vmul.f32 %v164, %v167
        %v188 = vmul.f32 %v165, %v168
        %v189 = vmul.f32 %v187, 1.7320508
        %v190 = vmul.f32 %v188, 1.7320508
        %s191 = scalar_lea.vmem %s161, 64 [#allocation5]
        %192 = vst [vmem:[%s191] sm:$0xff] %v189
        %193 = vst [vmem:[%s191 + $0x8] sm:$0xff] %v190
        %v194 = vmul.f32 %v167, %v167
        %v195 = vmul.f32 %v168, %v168
        %v196 = vmul.f32 %v164, %v164
        %v197 = vmul.f32 %v165, %v165
        %v198 = vmul.f32 %v170, %v170
        %v199 = vmul.f32 %v171, %v171
        %v200 = vadd.f32 %v196, %v198
        %v201 = vadd.f32 %v197, %v199
        %v202 = vmul.f32 %v200, 0.5
        %v203 = vmul.f32 %v201, 0.5
        %v204 = vsub.f32 %v194, %v202
        %v205 = vsub.f32 %v195, %v203
        %s206 = scalar_lea.vmem %s161, 80 [#allocation5]
        %207 = vst [vmem:[%s206] sm:$0xff] %v204
        %208 = vst [vmem:[%s206 + $0x8] sm:$0xff] %v205
        %v209 = vmul.f32 %v167, %v170
        %v210 = vmul.f32 %v168, %v171
        %v211 = vmul.f32 %v209, 1.7320508
        %v212 = vmul.f32 %v210, 1.7320508
        %s213 = scalar_lea.vmem %s161, 96 [#allocation5]
        %214 = vst [vmem:[%s213] sm:$0xff] %v211
        %215 = vst [vmem:[%s213 + $0x8] sm:$0xff] %v212
        %v216 = vsub.f32 %v198, %v196
        %v217 = vsub.f32 %v199, %v197
        %v218 = vmul.f32 %v216, 0.8660254
        %v219 = vmul.f32 %v217, 0.8660254
        %s220 = scalar_lea.vmem %s161, 112 [#allocation5]
        %221 = vst [vmem:[%s220] sm:$0xff] %v218
        %222 = vst [vmem:[%s220 + $0x8] sm:$0xff] %v219
        %s223 = sand.u32 %s52, 1
        %s224 = scalar_lea.sflag [#allocation4], %s223
        %s225 = sand.u32 %s52, 1
        %s226 = smul.addr %s225, 128
        %s227 = scalar_lea.vmem [#allocation5], %s226
        // Predicated region
        $region29: #{tpu_custom_call.1} parent=23 // pred_check
          %p228 = pneg %p62
        $region30: #{tpu_custom_call.1} parent=23 // pred_check_branch
          %230 = sbr.rel (%p228) target = $region32
        $region31: #{tpu_custom_call.1} parent=23 // pred_region
          #allocation9 [shape = 'u32[6]{0}', space=smem, size = 0x18, scoped, tag = 'DMA stride descriptor']
          %s231 = smul.u32 2, %s18
          %233 = vsyncadd %s224, 0
          %s234 = smul.addr %s231, 8
          %s235 = scalar_lea.hbm %s1, %s234
          %s237 = sshll.u32 1, 14
          %s238 = sxor.u32 4294967295, %s237
          %s241 = sshll.u32 7, 18
          %s242 = sxor.u32 4294967295, %s241
          %s243 = sand.u32 0, %s242
          %s245 = sor.u32 %s243, 0
          %s246 = sshll.u32 %s227, 4
          %s247 = int_to_ptr.vmem [resolvable:$true] %s246
          %s248 = sshll.u32 %s235, 4
          %s249 = int_to_ptr.hbm [resolvable:$true] %s248
          %255 = sst [smem:[#allocation9]] 256
          %s256 = scalar_lea.smem [#allocation9], 1
          %257 = sst [smem:[%s256]] 512
          %s258 = scalar_lea.smem [#allocation9], 2
          %259 = sst [smem:[%s258]] 2
          %s260 = scalar_lea.smem [#allocation9], 3
          %261 = sst [smem:[%s260]] 128
          %s262 = scalar_lea.smem [#allocation9], 4
          %263 = sst [smem:[%s262]] 128
          %s264 = scalar_lea.smem [#allocation9], 5
          %265 = sst [smem:[%s264]] 8
          %267 = dma.general %s247, 2048, %s249, %s224, [#allocation8], [#allocation9], %s245, 0
        $region32: #{tpu_custom_call.1} parent=23 // pred_fallthru
          _
      $region24: #{tpu_custom_call.1} parent=5 // pred_fallthru
        _
      %p268 = scmp.le.s32.totalorder 2, %s13
      // Predicated region
      $region33: #{tpu_custom_call.1} parent=5 // pred_check
        %p269 = pneg %p268
      $region34: #{tpu_custom_call.1} parent=5 // pred_check_branch
        %271 = sbr.rel (%p269) target = $region36
      $region35: #{tpu_custom_call.1} parent=5 // pred_region
        %s272 = ssub.s32 %s13, 2
        // Predicated region
        $region37: #{tpu_custom_call.1} parent=35 // pred_check
          %p273 = pneg %p68
        $region38: #{tpu_custom_call.1} parent=35 // pred_check_branch
          %275 = sbr.rel (%p273) target = $region40
        $region39: #{tpu_custom_call.1} parent=35 // pred_region
          %s276 = sand.u32 %s53, 1
          %s277 = scalar_lea.sflag [#allocation4], %s276
          %s278 = sand.u32 %s53, 1
          %s279 = smul.addr %s278, 128
          %s280 = scalar_lea.vmem [#allocation5], %s279
          %282 = dma.done %s277, 2048
        $region40: #{tpu_custom_call.1} parent=35 // pred_fallthru
          _
      $region36: #{tpu_custom_call.1} parent=5 // pred_fallthru
        _
    $region6: #{tpu_custom_call.1} parent=1 // loop_footer
      %s17 = sadd.s32 1, %s13
    $region7: #{tpu_custom_call.1} parent=1 // loop_footer_branch
      %12 = sbr.rel target = $region3
    $region8: #{tpu_custom_call.1} parent=1 // loop_exit
      _
    %283 = vsyncpa [#allocation3], 1
    %s284 = scalar_lea.sflag [#allocation3], 1
    %285 = vsyncpa %s284, 1
    %286 = vsyncpa [#allocation4], 1
    %s287 = scalar_lea.sflag [#allocation4], 1
    %288 = vsyncpa %s287, 1

</llo_original>
